<compile_context>
chip_gen: v7x
topology: tpu7x:2x2x1
jax: 0.10.0
libtpu: 0.0.40
codegen_flags: <defaults>
</compile_context>

<pallas_src>
import jax
import jax.numpy as jnp
from jax.experimental import pallas as pl
from jax.experimental.pallas import tpu as pltpu


def _merger_kernel(w_ref, x_ref, o_ref):
    """w_ref: [1, H, D] f32 (softmaxed), x_ref: [rows, H, D], o_ref: [rows, D]."""
    x = x_ref[...].astype(jnp.float32)          # upcast once; products in f32
    w = w_ref[...]                              # [1, H, D], broadcast over rows
    o_ref[...] = jnp.sum(x * w, axis=1).astype(o_ref.dtype)


def _padded_row_bytes(head, fea_dim, dtype):
    """VMEM bytes per batch row of an x block, including sublane/lane padding.

    The (H, D) trailing dims of each block pad to (sublane_tile, 128) in VMEM;
    the DMA only moves the raw data, but tile sizing must respect the padded
    footprint so double-buffered blocks fit the scoped VMEM limit.
    """
    itemsize = jnp.dtype(dtype).itemsize
    sublane = max(8, 32 // max(itemsize, 1))    # 8 for f32, 16 for bf16, 32 for int8
    h_pad = -(-head // sublane) * sublane
    d_pad = -(-fea_dim // 128) * 128
    return h_pad * d_pad * itemsize


def _pick_row_tile(num_rows, padded_row_bytes, target_bytes=4 << 20):
    """Fixed row tile (multiple of 8) for a pl.cdiv grid.

    ~4 MiB of padded x block per buffer (double-buffered: ~8-9 MiB total with
    the output) stays under every generation's scoped-VMEM default.  Capped at
    ceil(num_rows/2) rounded up to 8 so the grid has >= 2 steps whenever
    num_rows > 8 (pipeline overlap; even 2-TC sharding on v7x).
    """
    if num_rows <= 8:
        return num_rows                          # single full-extent block (legal)
    budget = max(8, (target_bytes // max(padded_row_bytes, 1)) // 8 * 8)
    half = -(-num_rows // 2)
    half8 = -(-half // 8) * 8
    return max(8, min(budget, half8))


def merger_forward(x, weight, *, head, block_rows=None):
    """Pallas implementation of Merger.forward.

    x:      [B, H, D]   (B = bs * n_agents in the parent module)
    weight: [1, H, D]   (only used when head > 1)
    returns [B, D]
    """
    B, H, D = x.shape
    if head == 1:
        # th.squeeze(x, dim=1) — pure glue, no kernel needed.
        return jnp.squeeze(x, axis=1)

    assert H == head

    # Hoisted, batch-independent work: softmax over heads on the tiny weight.
    w_sm = jax.nn.softmax(weight.astype(jnp.float32).reshape(1, H, D), axis=1)

    if block_rows is None:
        row_tile = _pick_row_tile(B, _padded_row_bytes(H, D, x.dtype))
    else:
        assert block_rows == B or block_rows % 8 == 0, (
            "block_rows must be a multiple of 8 or the full batch extent")
        row_tile = block_rows

    grid = (pl.cdiv(B, row_tile),)

    itemsize = jnp.dtype(x.dtype).itemsize
    cost = pl.CostEstimate(
        flops=2 * B * H * D,
        transcendentals=0,
        bytes_accessed=B * H * D * itemsize + H * D * 4 + B * D * itemsize,
    )

    return pl.pallas_call(
        _merger_kernel,
        out_shape=jax.ShapeDtypeStruct((B, D), x.dtype),
        grid_spec=pltpu.PrefetchScalarGridSpec(
            num_scalar_prefetch=0,
            grid=grid,
            in_specs=[
                # softmaxed weight: same tiny block every step -> stays resident
                pl.BlockSpec((1, H, D), lambda r: (0, 0, 0)),
                # x: contiguous [row_tile, H, D] slab straight from HBM
                pl.BlockSpec((row_tile, H, D), lambda r: (r, 0, 0)),
            ],
            out_specs=pl.BlockSpec((row_tile, D), lambda r: (r, 0)),
        ),
        compiler_params=pltpu.CompilerParams(
            dimension_semantics=("parallel",),
        ),
        cost_estimate=cost,
    )(w_sm, x)


def make_merger_params(head, fea_dim, dtype=jnp.float32):
    """Deterministic init matching the PyTorch module: weight filled with 1.0."""
    if head > 1:
        return {"weight": jnp.full((1, head, fea_dim), 1.0, dtype=dtype)}
    return {}


def _reference(x, weight, head):
    if head == 1:
        return jnp.squeeze(x, axis=1)
    sm = jax.nn.softmax(weight.astype(jnp.float32), axis=1)
    return jnp.sum(sm * x.astype(jnp.float32), axis=1).astype(x.dtype)


if __name__ == "__main__":
    key = jax.random.PRNGKey(0)

    # Shapes consistent with the parent module: the Merger sees
    # x = [bs * n_agents, hpn_head_num, rnn_hidden_dim].
    B, head, fea_dim = 128, 4, 64
    params = make_merger_params(head, fea_dim)
    x = jax.random.normal(key, (B, head, fea_dim), dtype=jnp.float32)

    out = jax.block_until_ready(merger_forward(x, params["weight"], head=head))
    ref = _reference(x, params["weight"], head)
    assert out.shape == (B, fea_dim)
    assert jnp.allclose(out, ref, atol=1e-5, rtol=1e-5)

    # Batch not a multiple of the row tile (and not of 8): exercises the
    # cdiv grid's partial trailing block with masked stores.
    x_odd = jax.random.normal(jax.random.PRNGKey(2), (100, head, fea_dim),
                              dtype=jnp.float32)
    out_odd = jax.block_until_ready(merger_forward(x_odd, params["weight"], head=head))
    assert jnp.allclose(out_odd, _reference(x_odd, params["weight"], head),
                        atol=1e-5, rtol=1e-5)

    # bf16 inputs: upcast once in-kernel, products + accumulate in f32.
    x_bf = x.astype(jnp.bfloat16)
    out_bf = jax.block_until_ready(merger_forward(x_bf, params["weight"], head=head))
    ref_bf = _reference(x_bf, params["weight"], head)
    assert jnp.allclose(out_bf.astype(jnp.float32), ref_bf.astype(jnp.float32),
                        atol=2e-2, rtol=2e-2)

    # Tiny batch (single full-extent block) path.
    x_small = jax.random.normal(jax.random.PRNGKey(3), (6, head, fea_dim),
                                dtype=jnp.float32)
    out_small = jax.block_until_ready(
        merger_forward(x_small, params["weight"], head=head))
    assert jnp.allclose(out_small, _reference(x_small, params["weight"], head),
                        atol=1e-5, rtol=1e-5)

    # head == 1: pure squeeze, no kernel needed.
    x1 = jax.random.normal(jax.random.PRNGKey(1), (B, 1, fea_dim),
                           dtype=jnp.float32)
    out1 = jax.block_until_ready(merger_forward(x1, None, head=1))
    assert out1.shape == (B, fea_dim)
    assert jnp.allclose(out1, x1[:, 0, :])

    # TODO(synk): the rest of SAttPE1_RNNAgent.forward (fc1_own, the
    # ScaledSelfAttention/PESymetryMean stacks, GRUCell, output heads) is left
    # to XLA; only the Merger (unify_input_heads) is kernelized here.
    print("KERNEL_OK")
</pallas_src>

<mosaic_0001>
module attributes {stable_mosaic.version = 11 : i64} {
  func.func @_merger_kernel(%arg0: i32, %arg1: memref<1x4x64xf32, #tpu.memory_space<vmem>>, %arg2: memref<64x4x64xf32, #tpu.memory_space<vmem>>, %arg3: memref<64x64xf32, #tpu.memory_space<vmem>>) attributes {dimension_semantics = [#tpu.dimension_semantics<parallel>], iteration_bounds = array<i64: 2>, scalar_prefetch = 0 : i64, scratch_operands = 0 : i64, tpu.core_type = #tpu.core_type<tc>, window_params = [{pipeline_mode = #tpu.pipeline_mode<synchronous>, transform_indices = @transform_0, window_bounds = array<i64: 1, 4, 64>}, {transform_indices = @transform_1, window_bounds = array<i64: 64, 4, 64>}, {transform_indices = @transform_2, window_bounds = array<i64: 64, 64>}]} {
    %c0 = arith.constant 0 : index
    %c0_0 = arith.constant 0 : index
    %c0_1 = arith.constant 0 : index
    %0 = vector.load %arg2[%c0, %c0_0, %c0_1] : memref<64x4x64xf32, #tpu.memory_space<vmem>>, vector<64x4x64xf32>
    %c0_2 = arith.constant 0 : index
    %c0_3 = arith.constant 0 : index
    %c0_4 = arith.constant 0 : index
    %1 = vector.load %arg1[%c0_2, %c0_3, %c0_4] : memref<1x4x64xf32, #tpu.memory_space<vmem>>, vector<1x4x64xf32>
    %2 = vector.broadcast %1 : vector<1x4x64xf32> to vector<64x4x64xf32>
    %3 = arith.mulf %0, %2 : vector<64x4x64xf32>
    %cst = arith.constant dense<0.000000e+00> : vector<64x64xf32>
    %4 = vector.multi_reduction <add>, %3, %cst [1] : vector<64x4x64xf32> to vector<64x64xf32>
    %c0_5 = arith.constant 0 : index
    %c0_6 = arith.constant 0 : index
    %5 = vector.load %arg3[%c0_5, %c0_6] : memref<64x64xf32, #tpu.memory_space<vmem>>, vector<64x64xf32>
    tpu.vector_store %arg3[%c0_5, %c0_6], %4 {strides = array<i32>} : memref<64x64xf32, #tpu.memory_space<vmem>>, vector<64x64xf32>,
    return
  }
  func.func @transform_0(%arg0: i32) -> (i32, i32, i32) {
    %c0_i32 = arith.constant 0 : i32
    %c0_i32_0 = arith.constant 0 : i32
    %c0_i32_1 = arith.constant 0 : i32
    %c0_i32_2 = arith.constant 0 : i32
    return %c0_i32, %c0_i32_0, %c0_i32_1 : i32, i32, i32
  }
  func.func @transform_1(%arg0: i32) -> (i32, i32, i32) {
    %c0_i32 = arith.constant 0 : i32
    %c0_i32_0 = arith.constant 0 : i32
    %c0_i32_1 = arith.constant 0 : i32
    return %arg0, %c0_i32, %c0_i32_0 : i32, i32, i32
  }
  func.func @transform_2(%arg0: i32) -> (i32, i32) {
    %c0_i32 = arith.constant 0 : i32
    %c0_i32_0 = arith.constant 0 : i32
    return %arg0, %c0_i32 : i32, i32
  }
}

</mosaic_0001>

<llo_original>
// kernel: tpu_custom_call.1
$region0: #{tpu_custom_call.1}
  #allocation0 [shape = 'u32[]', space=smem, size = 0x4, offset = 0x4, fixed_abs, tag = 'smem constant byte address 0x4 - core index']
  #allocation1 [shape = 'u32[144,128]{1,0:T(1,128)}', space=vmem, size = 0x12000, scoped, tag = 'internal scratch']
  %s0 = inlined_call_operand.vmem [shape: f32[1,4,64], index: 0, kind: input, shape index: {}]
  %s1 = inlined_call_operand.vmem [shape: f32[128,4,64], index: 1, kind: input, shape index: {}]
  %s2 = inlined_call_operand.vmem [shape: f32[128,64], index: 2, kind: output, shape index: {}]
  %s3 = sld [smem:[#allocation0]]
  $region41: #{tpu_custom_call.1} parent=0
    _
  %s5 = ssub.s32 1, %s3
  %s6 = scalar_select 0, %s5, %s3
  loop: start=0, step=1, limit=4
  $region2: #{tpu_custom_call.1} parent=0 // loop_pre_header
    _
  $region3: #{tpu_custom_call.1} parent=0 // loop_header
    %s8 = sphi 0, %s12
    %p9 = scmp.ge.s32.totalorder %s8, 4
    %s16 = sphi 0, %s16
    %s18 = sphi 0, %s16
    %s19 = sphi 0, %s18
    %s33 = sphi 0, %s19
    %s39 = sphi 0, %s41
    %s42 = sphi 0, %s39
    %s43 = sphi 0, %s42
    %s59 = sphi 0, %s43
    %s65 = sphi 0, %s67
    %s68 = sphi 0, %s65
    %s69 = sphi 0, %s68
    %s85 = sphi 0, %s69
  $region4: #{tpu_custom_call.1} parent=0 // loop_header_branch
    %11 = sbr.rel (%p9) target = $region8
  $region5: #{tpu_custom_call.1} parent=0 // loop_body
    %s13 = ssub.s32 %s8, 1
    %s14 = ssub.s32 %s8, 2
    %s15 = sadd.s32 %s8, 1
    %s17 = sadd.s32 %s16, 1
    %p20 = scmp.eq.s32.totalorder %s8, 1
    %p21 = scmp.ne.s32.totalorder %s16, %s18
    %p22 = scmp.eq.s32.totalorder %s8, 0
    %p23 = por %p21, %p22
    %p24 = scmp.ne.s32.totalorder %s16, %s18
    %p25 = scmp.eq.s32.totalorder %s13, 1
    %p26 = por %p24, %p25
    %p27 = scmp.ne.s32.totalorder %s18, %s19
    %p28 = scmp.eq.s32.totalorder %s13, 0
    %p29 = por %p27, %p28
    %p30 = scmp.ne.s32.totalorder %s18, %s19
    %p31 = scmp.eq.s32.totalorder %s14, 1
    %p32 = por %p30, %p31
    %p34 = scmp.ne.s32.totalorder %s19, %s33
    %p35 = scmp.eq.s32.totalorder %s14, 0
    %p36 = por %p34, %p35
    %s37 = ssub.s32 %s8, %s15
    %p38 = scmp.eq.s32.totalorder %s37, 0
    %s40 = sadd.s32 %s39, 1
    %s41 = scalar_select %p38, %s39, %s40
    %p44 = pneg %p38
    %p45 = scmp.eq.s32.totalorder %s8, 1
    %p46 = por %p44, %p45
    %p47 = scmp.ne.s32.totalorder %s39, %s42
    %p48 = scmp.eq.s32.totalorder %s8, 0
    %p49 = por %p47, %p48
    %p50 = scmp.ne.s32.totalorder %s39, %s42
    %p51 = scmp.eq.s32.totalorder %s13, 1
    %p52 = por %p50, %p51
    %p53 = scmp.ne.s32.totalorder %s42, %s43
    %p54 = scmp.eq.s32.totalorder %s13, 0
    %p55 = por %p53, %p54
    %p56 = scmp.ne.s32.totalorder %s42, %s43
    %p57 = scmp.eq.s32.totalorder %s14, 1
    %p58 = por %p56, %p57
    %p60 = scmp.ne.s32.totalorder %s43, %s59
    %p61 = scmp.eq.s32.totalorder %s14, 0
    %p62 = por %p60, %p61
    %s63 = ssub.s32 %s8, %s15
    %p64 = scmp.eq.s32.totalorder %s63, 0
    %s66 = sadd.s32 %s65, 1
    %s67 = scalar_select %p64, %s65, %s66
    %p70 = pneg %p64
    %p71 = scmp.eq.s32.totalorder %s8, 1
    %p72 = por %p70, %p71
    %p73 = scmp.ne.s32.totalorder %s65, %s68
    %p74 = scmp.eq.s32.totalorder %s8, 0
    %p75 = por %p73, %p74
    %p76 = scmp.ne.s32.totalorder %s65, %s68
    %p77 = scmp.eq.s32.totalorder %s13, 1
    %p78 = por %p76, %p77
    %p79 = scmp.ne.s32.totalorder %s68, %s69
    %p80 = scmp.eq.s32.totalorder %s13, 0
    %p81 = por %p79, %p80
    %p82 = scmp.ne.s32.totalorder %s68, %s69
    %p83 = scmp.eq.s32.totalorder %s14, 1
    %p84 = por %p82, %p83
    %p86 = scmp.ne.s32.totalorder %s69, %s85
    %p87 = scmp.eq.s32.totalorder %s14, 0
    %p88 = por %p86, %p87
    %p89 = scmp.le.s32.totalorder 1, %s8
    %p90 = scmp.lt.s32.totalorder %s8, 3
    %p91 = pnand %p89, %p90
    %p92 = pneg %p91
    // Predicated region
    $region9: #{tpu_custom_call.1} parent=5 // pred_check
      _
    $region10: #{tpu_custom_call.1} parent=5 // pred_check_branch
      %94 = sbr.rel (%p91) target = $region12
    $region11: #{tpu_custom_call.1} parent=5 // pred_region
      %s95 = ssub.s32 %s8, 1
      // Predicated region
      $region13: #{tpu_custom_call.1} parent=11 // pred_check
        %p96 = pneg %p29
      $region14: #{tpu_custom_call.1} parent=11 // pred_check_branch
        %98 = sbr.rel (%p96) target = $region16
      $region15: #{tpu_custom_call.1} parent=11 // pred_region
        _
      $region16: #{tpu_custom_call.1} parent=11 // pred_fallthru
        _
    $region12: #{tpu_custom_call.1} parent=5 // pred_fallthru
      _
    %p99 = scmp.lt.s32.totalorder %s8, 2
    // Predicated region
    $region17: #{tpu_custom_call.1} parent=5 // pred_check
      %p100 = pneg %p99
    $region18: #{tpu_custom_call.1} parent=5 // pred_check_branch
      %102 = sbr.rel (%p100) target = $region20
    $region19: #{tpu_custom_call.1} parent=5 // pred_region
      // Predicated region
      $region21: #{tpu_custom_call.1} parent=19 // pred_check
        %p103 = pneg %p49
      $region22: #{tpu_custom_call.1} parent=19 // pred_check_branch
        %105 = sbr.rel (%p103) target = $region24
      $region23: #{tpu_custom_call.1} parent=19 // pred_region
        %s106 = smul.u32 64, %s8
        %p107 = scmp.lt.s32.totalorder %s106, 127
        %s108 = scalar_select %p107, %s106, 127
        %s109 = smul.addr %s108, 4
        %s110 = scalar_lea.vmem %s1, %s109
        %s111 = smul.u32 64, %s8
      $region24: #{tpu_custom_call.1} parent=19 // pred_fallthru
        _
    $region20: #{tpu_custom_call.1} parent=5 // pred_fallthru
      _
    %p112 = scmp.le.s32.totalorder 1, %s8
    %p113 = scmp.lt.s32.totalorder %s8, 3
    %p114 = pnand %p112, %p113
    %p115 = pneg %p114
    // Predicated region
    $region25: #{tpu_custom_call.1} parent=5 // pred_check
      _
    $region26: #{tpu_custom_call.1} parent=5 // pred_check_branch
      %117 = sbr.rel (%p114) target = $region28
    $region27: #{tpu_custom_call.1} parent=5 // pred_region
      %s118 = ssub.s32 %s8, 1
      %p119 = pneg %p29
      %p120 = pneg %p26
      %s121 = smul.u32 64, %s13
      %p122 = scmp.lt.s32.totalorder %s121, 127
      %s123 = scalar_select %p122, %s121, 127
      %s124 = smul.addr %s123, 4
      %s125 = scalar_lea.vmem %s1, %s124
      %p126 = pneg %p55
      %p127 = pneg %p52
      %p128 = pneg %p81
      %p129 = pneg %p78
      %s130 = smul.u32 8, %s13
      %p131 = scmp.lt.s32.totalorder %s130, 15
      %s132 = scalar_select %p131, %s130, 15
      %s133 = smul.addr %s132, 8
      %s134 = scalar_lea.vmem %s2, %s133
      %s135 = smul.u32 64, %s13
      %p136 = scmp.lt.s32.totalorder %s135, 127
      %s137 = scalar_select %p136, %s135, 127
      %s138 = smul.addr %s137, 4
      %s139 = scalar_lea.vmem %s1, %s138
      %s140 = smul.u32 64, %s13
      %s141 = smul.u32 8, %s13
      %p142 = scmp.lt.s32.totalorder %s141, 15
      %s143 = scalar_select %p142, %s141, 15
      %s144 = smul.addr %s143, 8
      %s145 = scalar_lea.vmem %s2, %s144
      %s146 = smul.u32 8, %s13
      %v147 = vld [vmem:[%s139] sm:$0xf]
      %v148 = vld [vmem:[%s139 + $0x4] sm:$0xf]
      %v149 = vld [vmem:[%s139 + $0x8] sm:$0xf]
      %v150 = vld [vmem:[%s139 + $0xc] sm:$0xf]
      %v151 = vld [vmem:[%s139 + $0x10] sm:$0xf]
      %v152 = vld [vmem:[%s139 + $0x14] sm:$0xf]
      %v153 = vld [vmem:[%s139 + $0x18] sm:$0xf]
      %v154 = vld [vmem:[%s139 + $0x1c] sm:$0xf]
      %v155 = vld [vmem:[%s139 + $0x20] sm:$0xf]
      %v156 = vld [vmem:[%s139 + $0x24] sm:$0xf]
      %v157 = vld [vmem:[%s139 + $0x28] sm:$0xf]
      %v158 = vld [vmem:[%s139 + $0x2c] sm:$0xf]
      %v159 = vld [vmem:[%s139 + $0x30] sm:$0xf]
      %v160 = vld [vmem:[%s139 + $0x34] sm:$0xf]
      %v161 = vld [vmem:[%s139 + $0x38] sm:$0xf]
      %v162 = vld [vmem:[%s139 + $0x3c] sm:$0xf]
      %v163 = vld [vmem:[%s139 + $0x40] sm:$0xf]
      %v164 = vld [vmem:[%s139 + $0x44] sm:$0xf]
      %v165 = vld [vmem:[%s139 + $0x48] sm:$0xf]
      %v166 = vld [vmem:[%s139 + $0x4c] sm:$0xf]
      %v167 = vld [vmem:[%s139 + $0x50] sm:$0xf]
      %v168 = vld [vmem:[%s139 + $0x54] sm:$0xf]
      %v169 = vld [vmem:[%s139 + $0x58] sm:$0xf]
      %v170 = vld [vmem:[%s139 + $0x5c] sm:$0xf]
      %v171 = vld [vmem:[%s139 + $0x60] sm:$0xf]
      %v172 = vld [vmem:[%s139 + $0x64] sm:$0xf]
      %v173 = vld [vmem:[%s139 + $0x68] sm:$0xf]
      %v174 = vld [vmem:[%s139 + $0x6c] sm:$0xf]
      %v175 = vld [vmem:[%s139 + $0x70] sm:$0xf]
      %v176 = vld [vmem:[%s139 + $0x74] sm:$0xf]
      %v177 = vld [vmem:[%s139 + $0x78] sm:$0xf]
      %v178 = vld [vmem:[%s139 + $0x7c] sm:$0xf]
      %v179 = vld [vmem:[%s139 + $0x80] sm:$0xf]
      %v180 = vld [vmem:[%s139 + $0x84] sm:$0xf]
      %v181 = vld [vmem:[%s139 + $0x88] sm:$0xf]
      %v182 = vld [vmem:[%s139 + $0x8c] sm:$0xf]
      %v183 = vld [vmem:[%s139 + $0x90] sm:$0xf]
      %v184 = vld [vmem:[%s139 + $0x94] sm:$0xf]
      %v185 = vld [vmem:[%s139 + $0x98] sm:$0xf]
      %v186 = vld [vmem:[%s139 + $0x9c] sm:$0xf]
      %v187 = vld [vmem:[%s139 + $0xa0] sm:$0xf]
      %v188 = vld [vmem:[%s139 + $0xa4] sm:$0xf]
      %v189 = vld [vmem:[%s139 + $0xa8] sm:$0xf]
      %v190 = vld [vmem:[%s139 + $0xac] sm:$0xf]
      %v191 = vld [vmem:[%s139 + $0xb0] sm:$0xf]
      %v192 = vld [vmem:[%s139 + $0xb4] sm:$0xf]
      %v193 = vld [vmem:[%s139 + $0xb8] sm:$0xf]
      %v194 = vld [vmem:[%s139 + $0xbc] sm:$0xf]
      %v195 = vld [vmem:[%s139 + $0xc0] sm:$0xf]
      %v196 = vld [vmem:[%s139 + $0xc4] sm:$0xf]
      %v197 = vld [vmem:[%s139 + $0xc8] sm:$0xf]
      %v198 = vld [vmem:[%s139 + $0xcc] sm:$0xf]
      %v199 = vld [vmem:[%s139 + $0xd0] sm:$0xf]
      %v200 = vld [vmem:[%s139 + $0xd4] sm:$0xf]
      %v201 = vld [vmem:[%s139 + $0xd8] sm:$0xf]
      %v202 = vld [vmem:[%s139 + $0xdc] sm:$0xf]
      %v203 = vld [vmem:[%s139 + $0xe0] sm:$0xf]
      %v204 = vld [vmem:[%s139 + $0xe4] sm:$0xf]
      %v205 = vld [vmem:[%s139 + $0xe8] sm:$0xf]
      %v206 = vld [vmem:[%s139 + $0xec] sm:$0xf]
      %v207 = vld [vmem:[%s139 + $0xf0] sm:$0xf]
      %v208 = vld [vmem:[%s139 + $0xf4] sm:$0xf]
      %v209 = vld [vmem:[%s139 + $0xf8] sm:$0xf]
      %v210 = vld [vmem:[%s139 + $0xfc] sm:$0xf]
      %v211 = vld [vmem:[%s0] sm:$0xf]
      %v212 = vmul.f32 %v147, %v211
      %v213 = vmul.f32 %v148, %v211
      %v214 = vmul.f32 %v149, %v211
      %v215 = vmul.f32 %v150, %v211
      %v216 = vmul.f32 %v151, %v211
      %v217 = vmul.f32 %v152, %v211
      %v218 = vmul.f32 %v153, %v211
      %v219 = vmul.f32 %v154, %v211
      %v220 = vmul.f32 %v155, %v211
      %v221 = vmul.f32 %v156, %v211
      %v222 = vmul.f32 %v157, %v211
      %v223 = vmul.f32 %v158, %v211
      %v224 = vmul.f32 %v159, %v211
      %v225 = vmul.f32 %v160, %v211
      %v226 = vmul.f32 %v161, %v211
      %v227 = vmul.f32 %v162, %v211
      %v228 = vmul.f32 %v163, %v211
      %v229 = vmul.f32 %v164, %v211
      %v230 = vmul.f32 %v165, %v211
      %v231 = vmul.f32 %v166, %v211
      %v232 = vmul.f32 %v167, %v211
      %v233 = vmul.f32 %v168, %v211
      %v234 = vmul.f32 %v169, %v211
      %v235 = vmul.f32 %v170, %v211
      %v236 = vmul.f32 %v171, %v211
      %v237 = vmul.f32 %v172, %v211
      %v238 = vmul.f32 %v173, %v211
      %v239 = vmul.f32 %v174, %v211
      %v240 = vmul.f32 %v175, %v211
      %v241 = vmul.f32 %v176, %v211
      %v242 = vmul.f32 %v177, %v211
      %v243 = vmul.f32 %v178, %v211
      %v244 = vmul.f32 %v179, %v211
      %v245 = vmul.f32 %v180, %v211
      %v246 = vmul.f32 %v181, %v211
      %v247 = vmul.f32 %v182, %v211
      %v248 = vmul.f32 %v183, %v211
      %v249 = vmul.f32 %v184, %v211
      %v250 = vmul.f32 %v185, %v211
      %v251 = vmul.f32 %v186, %v211
      %v252 = vmul.f32 %v187, %v211
      %v253 = vmul.f32 %v188, %v211
      %v254 = vmul.f32 %v189, %v211
      %v255 = vmul.f32 %v190, %v211
      %v256 = vmul.f32 %v191, %v211
      %v257 = vmul.f32 %v192, %v211
      %v258 = vmul.f32 %v193, %v211
      %v259 = vmul.f32 %v194, %v211
      %v260 = vmul.f32 %v195, %v211
      %v261 = vmul.f32 %v196, %v211
      %v262 = vmul.f32 %v197, %v211
      %v263 = vmul.f32 %v198, %v211
      %v264 = vmul.f32 %v199, %v211
      %v265 = vmul.f32 %v200, %v211
      %v266 = vmul.f32 %v201, %v211
      %v267 = vmul.f32 %v202, %v211
      %v268 = vmul.f32 %v203, %v211
      %v269 = vmul.f32 %v204, %v211
      %v270 = vmul.f32 %v205, %v211
      %v271 = vmul.f32 %v206, %v211
      %v272 = vmul.f32 %v207, %v211
      %v273 = vmul.f32 %v208, %v211
      %v274 = vmul.f32 %v209, %v211
      %v275 = vmul.f32 %v210, %v211
      %vm276 = vcmask 519168
      %v277 = vsel %vm276, %v212, 0.0
      %v278 = vrot.slane %v277, 4
      %v279 = vadd.f32 %v277, %v278
      %v280 = vrot.slane %v279, 2
      %v281 = vadd.f32 %v279, %v280
      %v282 = vrot.slane %v281, 1
      %v283 = vadd.f32 %v281, %v282
      %v284 = vsel %vm276, %v213, 0.0
      %v285 = vrot.slane %v284, 4
      %v286 = vadd.f32 %v284, %v285
      %v287 = vrot.slane %v286, 2
      %v288 = vadd.f32 %v286, %v287
      %v289 = vrot.slane %v288, 1
      %v290 = vadd.f32 %v288, %v289
      %v291 = vsel %vm276, %v214, 0.0
      %v292 = vrot.slane %v291, 4
      %v293 = vadd.f32 %v291, %v292
      %v294 = vrot.slane %v293, 2
      %v295 = vadd.f32 %v293, %v294
      %v296 = vrot.slane %v295, 1
      %v297 = vadd.f32 %v295, %v296
      %v298 = vsel %vm276, %v215, 0.0
      %v299 = vrot.slane %v298, 4
      %v300 = vadd.f32 %v298, %v299
      %v301 = vrot.slane %v300, 2
      %v302 = vadd.f32 %v300, %v301
      %v303 = vrot.slane %v302, 1
      %v304 = vadd.f32 %v302, %v303
      %v305 = vsel %vm276, %v216, 0.0
      %v306 = vrot.slane %v305, 4
      %v307 = vadd.f32 %v305, %v306
      %v308 = vrot.slane %v307, 2
      %v309 = vadd.f32 %v307, %v308
      %v310 = vrot.slane %v309, 1
      %v311 = vadd.f32 %v309, %v310
      %v312 = vsel %vm276, %v217, 0.0
      %v313 = vrot.slane %v312, 4
      %v314 = vadd.f32 %v312, %v313
      %v315 = vrot.slane %v314, 2
      %v316 = vadd.f32 %v314, %v315
      %v317 = vrot.slane %v316, 1
      %v318 = vadd.f32 %v316, %v317
      %v319 = vsel %vm276, %v218, 0.0
      %v320 = vrot.slane %v319, 4
      %v321 = vadd.f32 %v319, %v320
      %v322 = vrot.slane %v321, 2
      %v323 = vadd.f32 %v321, %v322
      %v324 = vrot.slane %v323, 1
      %v325 = vadd.f32 %v323, %v324
      %v326 = vsel %vm276, %v219, 0.0
      %v327 = vrot.slane %v326, 4
      %v328 = vadd.f32 %v326, %v327
      %v329 = vrot.slane %v328, 2
      %v330 = vadd.f32 %v328, %v329
      %v331 = vrot.slane %v330, 1
      %v332 = vadd.f32 %v330, %v331
      %v333 = vsel %vm276, %v220, 0.0
      %v334 = vrot.slane %v333, 4
      %v335 = vadd.f32 %v333, %v334
      %v336 = vrot.slane %v335, 2
      %v337 = vadd.f32 %v335, %v336
      %v338 = vrot.slane %v337, 1
      %v339 = vadd.f32 %v337, %v338
      %v340 = vsel %vm276, %v221, 0.0
      %v341 = vrot.slane %v340, 4
      %v342 = vadd.f32 %v340, %v341
      %v343 = vrot.slane %v342, 2
      %v344 = vadd.f32 %v342, %v343
      %v345 = vrot.slane %v344, 1
      %v346 = vadd.f32 %v344, %v345
      %v347 = vsel %vm276, %v222, 0.0
      %v348 = vrot.slane %v347, 4
      %v349 = vadd.f32 %v347, %v348
      %v350 = vrot.slane %v349, 2
      %v351 = vadd.f32 %v349, %v350
      %v352 = vrot.slane %v351, 1
      %v353 = vadd.f32 %v351, %v352
      %v354 = vsel %vm276, %v223, 0.0
      %v355 = vrot.slane %v354, 4
      %v356 = vadd.f32 %v354, %v355
      %v357 = vrot.slane %v356, 2
      %v358 = vadd.f32 %v356, %v357
      %v359 = vrot.slane %v358, 1
      %v360 = vadd.f32 %v358, %v359
      %v361 = vsel %vm276, %v224, 0.0
      %v362 = vrot.slane %v361, 4
      %v363 = vadd.f32 %v361, %v362
      %v364 = vrot.slane %v363, 2
      %v365 = vadd.f32 %v363, %v364
      %v366 = vrot.slane %v365, 1
      %v367 = vadd.f32 %v365, %v366
      %v368 = vsel %vm276, %v225, 0.0
      %v369 = vrot.slane %v368, 4
      %v370 = vadd.f32 %v368, %v369
      %v371 = vrot.slane %v370, 2
      %v372 = vadd.f32 %v370, %v371
      %v373 = vrot.slane %v372, 1
      %v374 = vadd.f32 %v372, %v373
      %v375 = vsel %vm276, %v226, 0.0
      %v376 = vrot.slane %v375, 4
      %v377 = vadd.f32 %v375, %v376
      %v378 = vrot.slane %v377, 2
      %v379 = vadd.f32 %v377, %v378
      %v380 = vrot.slane %v379, 1
      %v381 = vadd.f32 %v379, %v380
      %v382 = vsel %vm276, %v227, 0.0
      %v383 = vrot.slane %v382, 4
      %v384 = vadd.f32 %v382, %v383
      %v385 = vrot.slane %v384, 2
      %v386 = vadd.f32 %v384, %v385
      %v387 = vrot.slane %v386, 1
      %v388 = vadd.f32 %v386, %v387
      %v389 = vsel %vm276, %v228, 0.0
      %v390 = vrot.slane %v389, 4
      %v391 = vadd.f32 %v389, %v390
      %v392 = vrot.slane %v391, 2
      %v393 = vadd.f32 %v391, %v392
      %v394 = vrot.slane %v393, 1
      %v395 = vadd.f32 %v393, %v394
      %v396 = vsel %vm276, %v229, 0.0
      %v397 = vrot.slane %v396, 4
      %v398 = vadd.f32 %v396, %v397
      %v399 = vrot.slane %v398, 2
      %v400 = vadd.f32 %v398, %v399
      %v401 = vrot.slane %v400, 1
      %v402 = vadd.f32 %v400, %v401
      %v403 = vsel %vm276, %v230, 0.0
      %v404 = vrot.slane %v403, 4
      %v405 = vadd.f32 %v403, %v404
      %v406 = vrot.slane %v405, 2
      %v407 = vadd.f32 %v405, %v406
      %v408 = vrot.slane %v407, 1
      %v409 = vadd.f32 %v407, %v408
      %v410 = vsel %vm276, %v231, 0.0
      %v411 = vrot.slane %v410, 4
      %v412 = vadd.f32 %v410, %v411
      %v413 = vrot.slane %v412, 2
      %v414 = vadd.f32 %v412, %v413
      %v415 = vrot.slane %v414, 1
      %v416 = vadd.f32 %v414, %v415
      %v417 = vsel %vm276, %v232, 0.0
      %v418 = vrot.slane %v417, 4
      %v419 = vadd.f32 %v417, %v418
      %v420 = vrot.slane %v419, 2
      %v421 = vadd.f32 %v419, %v420
      %v422 = vrot.slane %v421, 1
      %v423 = vadd.f32 %v421, %v422
      %v424 = vsel %vm276, %v233, 0.0
      %v425 = vrot.slane %v424, 4
      %v426 = vadd.f32 %v424, %v425
      %v427 = vrot.slane %v426, 2
      %v428 = vadd.f32 %v426, %v427
      %v429 = vrot.slane %v428, 1
      %v430 = vadd.f32 %v428, %v429
      %v431 = vsel %vm276, %v234, 0.0
      %v432 = vrot.slane %v431, 4
      %v433 = vadd.f32 %v431, %v432
      %v434 = vrot.slane %v433, 2
      %v435 = vadd.f32 %v433, %v434
      %v436 = vrot.slane %v435, 1
      %v437 = vadd.f32 %v435, %v436
      %v438 = vsel %vm276, %v235, 0.0
      %v439 = vrot.slane %v438, 4
      %v440 = vadd.f32 %v438, %v439
      %v441 = vrot.slane %v440, 2
      %v442 = vadd.f32 %v440, %v441
      %v443 = vrot.slane %v442, 1
      %v444 = vadd.f32 %v442, %v443
      %v445 = vsel %vm276, %v236, 0.0
      %v446 = vrot.slane %v445, 4
      %v447 = vadd.f32 %v445, %v446
      %v448 = vrot.slane %v447, 2
      %v449 = vadd.f32 %v447, %v448
      %v450 = vrot.slane %v449, 1
      %v451 = vadd.f32 %v449, %v450
      %v452 = vsel %vm276, %v237, 0.0
      %v453 = vrot.slane %v452, 4
      %v454 = vadd.f32 %v452, %v453
      %v455 = vrot.slane %v454, 2
      %v456 = vadd.f32 %v454, %v455
      %v457 = vrot.slane %v456, 1
      %v458 = vadd.f32 %v456, %v457
      %v459 = vsel %vm276, %v238, 0.0
      %v460 = vrot.slane %v459, 4
      %v461 = vadd.f32 %v459, %v460
      %v462 = vrot.slane %v461, 2
      %v463 = vadd.f32 %v461, %v462
      %v464 = vrot.slane %v463, 1
      %v465 = vadd.f32 %v463, %v464
      %v466 = vsel %vm276, %v239, 0.0
      %v467 = vrot.slane %v466, 4
      %v468 = vadd.f32 %v466, %v467
      %v469 = vrot.slane %v468, 2
      %v470 = vadd.f32 %v468, %v469
      %v471 = vrot.slane %v470, 1
      %v472 = vadd.f32 %v470, %v471
      %v473 = vsel %vm276, %v240, 0.0
      %v474 = vrot.slane %v473, 4
      %v475 = vadd.f32 %v473, %v474
      %v476 = vrot.slane %v475, 2
      %v477 = vadd.f32 %v475, %v476
      %v478 = vrot.slane %v477, 1
      %v479 = vadd.f32 %v477, %v478
      %v480 = vsel %vm276, %v241, 0.0
      %v481 = vrot.slane %v480, 4
      %v482 = vadd.f32 %v480, %v481
      %v483 = vrot.slane %v482, 2
      %v484 = vadd.f32 %v482, %v483
      %v485 = vrot.slane %v484, 1
      %v486 = vadd.f32 %v484, %v485
      %v487 = vsel %vm276, %v242, 0.0
      %v488 = vrot.slane %v487, 4
      %v489 = vadd.f32 %v487, %v488
      %v490 = vrot.slane %v489, 2
      %v491 = vadd.f32 %v489, %v490
      %v492 = vrot.slane %v491, 1
      %v493 = vadd.f32 %v491, %v492
      %v494 = vsel %vm276, %v243, 0.0
      %v495 = vrot.slane %v494, 4
      %v496 = vadd.f32 %v494, %v495
      %v497 = vrot.slane %v496, 2
      %v498 = vadd.f32 %v496, %v497
      %v499 = vrot.slane %v498, 1
      %v500 = vadd.f32 %v498, %v499
      %v501 = vsel %vm276, %v244, 0.0
      %v502 = vrot.slane %v501, 4
      %v503 = vadd.f32 %v501, %v502
      %v504 = vrot.slane %v503, 2
      %v505 = vadd.f32 %v503, %v504
      %v506 = vrot.slane %v505, 1
      %v507 = vadd.f32 %v505, %v506
      %v508 = vsel %vm276, %v245, 0.0
      %v509 = vrot.slane %v508, 4
      %v510 = vadd.f32 %v508, %v509
      %v511 = vrot.slane %v510, 2
      %v512 = vadd.f32 %v510, %v511
      %v513 = vrot.slane %v512, 1
      %v514 = vadd.f32 %v512, %v513
      %v515 = vsel %vm276, %v246, 0.0
      %v516 = vrot.slane %v515, 4
      %v517 = vadd.f32 %v515, %v516
      %v518 = vrot.slane %v517, 2
      %v519 = vadd.f32 %v517, %v518
      %v520 = vrot.slane %v519, 1
      %v521 = vadd.f32 %v519, %v520
      %v522 = vsel %vm276, %v247, 0.0
      %v523 = vrot.slane %v522, 4
      %v524 = vadd.f32 %v522, %v523
      %v525 = vrot.slane %v524, 2
      %v526 = vadd.f32 %v524, %v525
      %v527 = vrot.slane %v526, 1
      %v528 = vadd.f32 %v526, %v527
      %v529 = vsel %vm276, %v248, 0.0
      %v530 = vrot.slane %v529, 4
      %v531 = vadd.f32 %v529, %v530
      %v532 = vrot.slane %v531, 2
      %v533 = vadd.f32 %v531, %v532
      %v534 = vrot.slane %v533, 1
      %v535 = vadd.f32 %v533, %v534
      %v536 = vsel %vm276, %v249, 0.0
      %v537 = vrot.slane %v536, 4
      %v538 = vadd.f32 %v536, %v537
      %v539 = vrot.slane %v538, 2
      %v540 = vadd.f32 %v538, %v539
      %v541 = vrot.slane %v540, 1
      %v542 = vadd.f32 %v540, %v541
      %v543 = vsel %vm276, %v250, 0.0
      %v544 = vrot.slane %v543, 4
      %v545 = vadd.f32 %v543, %v544
      %v546 = vrot.slane %v545, 2
      %v547 = vadd.f32 %v545, %v546
      %v548 = vrot.slane %v547, 1
      %v549 = vadd.f32 %v547, %v548
      %v550 = vsel %vm276, %v251, 0.0
      %v551 = vrot.slane %v550, 4
      %v552 = vadd.f32 %v550, %v551
      %v553 = vrot.slane %v552, 2
      %v554 = vadd.f32 %v552, %v553
      %v555 = vrot.slane %v554, 1
      %v556 = vadd.f32 %v554, %v555
      %v557 = vsel %vm276, %v252, 0.0
      %v558 = vrot.slane %v557, 4
      %v559 = vadd.f32 %v557, %v558
      %v560 = vrot.slane %v559, 2
      %v561 = vadd.f32 %v559, %v560
      %v562 = vrot.slane %v561, 1
      %v563 = vadd.f32 %v561, %v562
      %v564 = vsel %vm276, %v253, 0.0
      %v565 = vrot.slane %v564, 4
      %v566 = vadd.f32 %v564, %v565
      %v567 = vrot.slane %v566, 2
      %v568 = vadd.f32 %v566, %v567
      %v569 = vrot.slane %v568, 1
      %v570 = vadd.f32 %v568, %v569
      %v571 = vsel %vm276, %v254, 0.0
      %v572 = vrot.slane %v571, 4
      %v573 = vadd.f32 %v571, %v572
      %v574 = vrot.slane %v573, 2
      %v575 = vadd.f32 %v573, %v574
      %v576 = vrot.slane %v575, 1
      %v577 = vadd.f32 %v575, %v576
      %v578 = vsel %vm276, %v255, 0.0
      %v579 = vrot.slane %v578, 4
      %v580 = vadd.f32 %v578, %v579
      %v581 = vrot.slane %v580, 2
      %v582 = vadd.f32 %v580, %v581
      %v583 = vrot.slane %v582, 1
      %v584 = vadd.f32 %v582, %v583
      %v585 = vsel %vm276, %v256, 0.0
      %v586 = vrot.slane %v585, 4
      %v587 = vadd.f32 %v585, %v586
      %v588 = vrot.slane %v587, 2
      %v589 = vadd.f32 %v587, %v588
      %v590 = vrot.slane %v589, 1
      %v591 = vadd.f32 %v589, %v590
      %v592 = vsel %vm276, %v257, 0.0
      %v593 = vrot.slane %v592, 4
      %v594 = vadd.f32 %v592, %v593
      %v595 = vrot.slane %v594, 2
      %v596 = vadd.f32 %v594, %v595
      %v597 = vrot.slane %v596, 1
      %v598 = vadd.f32 %v596, %v597
      %v599 = vsel %vm276, %v258, 0.0
      %v600 = vrot.slane %v599, 4
      %v601 = vadd.f32 %v599, %v600
      %v602 = vrot.slane %v601, 2
      %v603 = vadd.f32 %v601, %v602
      %v604 = vrot.slane %v603, 1
      %v605 = vadd.f32 %v603, %v604
      %v606 = vsel %vm276, %v259, 0.0
      %v607 = vrot.slane %v606, 4
      %v608 = vadd.f32 %v606, %v607
      %v609 = vrot.slane %v608, 2
      %v610 = vadd.f32 %v608, %v609
      %v611 = vrot.slane %v610, 1
      %v612 = vadd.f32 %v610, %v611
      %v613 = vsel %vm276, %v260, 0.0
      %v614 = vrot.slane %v613, 4
      %v615 = vadd.f32 %v613, %v614
      %v616 = vrot.slane %v615, 2
      %v617 = vadd.f32 %v615, %v616
      %v618 = vrot.slane %v617, 1
      %v619 = vadd.f32 %v617, %v618
      %v620 = vsel %vm276, %v261, 0.0
      %v621 = vrot.slane %v620, 4
      %v622 = vadd.f32 %v620, %v621
      %v623 = vrot.slane %v622, 2
      %v624 = vadd.f32 %v622, %v623
      %v625 = vrot.slane %v624, 1
      %v626 = vadd.f32 %v624, %v625
      %v627 = vsel %vm276, %v262, 0.0
      %v628 = vrot.slane %v627, 4
      %v629 = vadd.f32 %v627, %v628
      %v630 = vrot.slane %v629, 2
      %v631 = vadd.f32 %v629, %v630
      %v632 = vrot.slane %v631, 1
      %v633 = vadd.f32 %v631, %v632
      %v634 = vsel %vm276, %v263, 0.0
      %v635 = vrot.slane %v634, 4
      %v636 = vadd.f32 %v634, %v635
      %v637 = vrot.slane %v636, 2
      %v638 = vadd.f32 %v636, %v637
      %v639 = vrot.slane %v638, 1
      %v640 = vadd.f32 %v638, %v639
      %v641 = vsel %vm276, %v264, 0.0
      %v642 = vrot.slane %v641, 4
      %v643 = vadd.f32 %v641, %v642
      %v644 = vrot.slane %v643, 2
      %v645 = vadd.f32 %v643, %v644
      %v646 = vrot.slane %v645, 1
      %v647 = vadd.f32 %v645, %v646
      %v648 = vsel %vm276, %v265, 0.0
      %v649 = vrot.slane %v648, 4
      %v650 = vadd.f32 %v648, %v649
      %v651 = vrot.slane %v650, 2
      %v652 = vadd.f32 %v650, %v651
      %v653 = vrot.slane %v652, 1
      %v654 = vadd.f32 %v652, %v653
      %v655 = vsel %vm276, %v266, 0.0
      %v656 = vrot.slane %v655, 4
      %v657 = vadd.f32 %v655, %v656
      %v658 = vrot.slane %v657, 2
      %v659 = vadd.f32 %v657, %v658
      %v660 = vrot.slane %v659, 1
      %v661 = vadd.f32 %v659, %v660
      %v662 = vsel %vm276, %v267, 0.0
      %v663 = vrot.slane %v662, 4
      %v664 = vadd.f32 %v662, %v663
      %v665 = vrot.slane %v664, 2
      %v666 = vadd.f32 %v664, %v665
      %v667 = vrot.slane %v666, 1
      %v668 = vadd.f32 %v666, %v667
      %v669 = vsel %vm276, %v268, 0.0
      %v670 = vrot.slane %v669, 4
      %v671 = vadd.f32 %v669, %v670
      %v672 = vrot.slane %v671, 2
      %v673 = vadd.f32 %v671, %v672
      %v674 = vrot.slane %v673, 1
      %v675 = vadd.f32 %v673, %v674
      %v676 = vsel %vm276, %v269, 0.0
      %v677 = vrot.slane %v676, 4
      %v678 = vadd.f32 %v676, %v677
      %v679 = vrot.slane %v678, 2
      %v680 = vadd.f32 %v678, %v679
      %v681 = vrot.slane %v680, 1
      %v682 = vadd.f32 %v680, %v681
      %v683 = vsel %vm276, %v270, 0.0
      %v684 = vrot.slane %v683, 4
      %v685 = vadd.f32 %v683, %v684
      %v686 = vrot.slane %v685, 2
      %v687 = vadd.f32 %v685, %v686
      %v688 = vrot.slane %v687, 1
      %v689 = vadd.f32 %v687, %v688
      %v690 = vsel %vm276, %v271, 0.0
      %v691 = vrot.slane %v690, 4
      %v692 = vadd.f32 %v690, %v691
      %v693 = vrot.slane %v692, 2
      %v694 = vadd.f32 %v692, %v693
      %v695 = vrot.slane %v694, 1
      %v696 = vadd.f32 %v694, %v695
      %v697 = vsel %vm276, %v272, 0.0
      %v698 = vrot.slane %v697, 4
      %v699 = vadd.f32 %v697, %v698
      %v700 = vrot.slane %v699, 2
      %v701 = vadd.f32 %v699, %v700
      %v702 = vrot.slane %v701, 1
      %v703 = vadd.f32 %v701, %v702
      %v704 = vsel %vm276, %v273, 0.0
      %v705 = vrot.slane %v704, 4
      %v706 = vadd.f32 %v704, %v705
      %v707 = vrot.slane %v706, 2
      %v708 = vadd.f32 %v706, %v707
      %v709 = vrot.slane %v708, 1
      %v710 = vadd.f32 %v708, %v709
      %v711 = vsel %vm276, %v274, 0.0
      %v712 = vrot.slane %v711, 4
      %v713 = vadd.f32 %v711, %v712
      %v714 = vrot.slane %v713, 2
      %v715 = vadd.f32 %v713, %v714
      %v716 = vrot.slane %v715, 1
      %v717 = vadd.f32 %v715, %v716
      %v718 = vsel %vm276, %v275, 0.0
      %v719 = vrot.slane %v718, 4
      %v720 = vadd.f32 %v718, %v719
      %v721 = vrot.slane %v720, 2
      %v722 = vadd.f32 %v720, %v721
      %v723 = vrot.slane %v722, 1
      %v724 = vadd.f32 %v722, %v723
      %vm789 = vcmask 1041409
      %v790 = vsel %vm789, %v290, %v283
      %vm791 = vcmask 1042434
      %v792 = vsel %vm791, %v297, %v790
      %vm793 = vcmask 1043459
      %v794 = vsel %vm793, %v304, %v792
      %vm795 = vcmask 1044484
      %v796 = vsel %vm795, %v311, %v794
      %vm797 = vcmask 1045509
      %v798 = vsel %vm797, %v318, %v796
      %vm799 = vcmask 1046534
      %v800 = vsel %vm799, %v325, %v798
      %vm801 = vcmask 1047559
      %v802 = vsel %vm801, %v332, %v800
      %v803 = vsel %vm789, %v346, %v339
      %v804 = vsel %vm791, %v353, %v803
      %v805 = vsel %vm793, %v360, %v804
      %v806 = vsel %vm795, %v367, %v805
      %v807 = vsel %vm797, %v374, %v806
      %v808 = vsel %vm799, %v381, %v807
      %v809 = vsel %vm801, %v388, %v808
      %v810 = vsel %vm789, %v402, %v395
      %v811 = vsel %vm791, %v409, %v810
      %v812 = vsel %vm793, %v416, %v811
      %v813 = vsel %vm795, %v423, %v812
      %v814 = vsel %vm797, %v430, %v813
      %v815 = vsel %vm799, %v437, %v814
      %v816 = vsel %vm801, %v444, %v815
      %v817 = vsel %vm789, %v458, %v451
      %v818 = vsel %vm791, %v465, %v817
      %v819 = vsel %vm793, %v472, %v818
      %v820 = vsel %vm795, %v479, %v819
      %v821 = vsel %vm797, %v486, %v820
      %v822 = vsel %vm799, %v493, %v821
      %v823 = vsel %vm801, %v500, %v822
      %v824 = vsel %vm789, %v514, %v507
      %v825 = vsel %vm791, %v521, %v824
      %v826 = vsel %vm793, %v528, %v825
      %v827 = vsel %vm795, %v535, %v826
      %v828 = vsel %vm797, %v542, %v827
      %v829 = vsel %vm799, %v549, %v828
      %v830 = vsel %vm801, %v556, %v829
      %v831 = vsel %vm789, %v570, %v563
      %v832 = vsel %vm791, %v577, %v831
      %v833 = vsel %vm793, %v584, %v832
      %v834 = vsel %vm795, %v591, %v833
      %v835 = vsel %vm797, %v598, %v834
      %v836 = vsel %vm799, %v605, %v835
      %v837 = vsel %vm801, %v612, %v836
      %v838 = vsel %vm789, %v626, %v619
      %v839 = vsel %vm791, %v633, %v838
      %v840 = vsel %vm793, %v640, %v839
      %v841 = vsel %vm795, %v647, %v840
      %v842 = vsel %vm797, %v654, %v841
      %v843 = vsel %vm799, %v661, %v842
      %v844 = vsel %vm801, %v668, %v843
      %v845 = vsel %vm789, %v682, %v675
      %v846 = vsel %vm791, %v689, %v845
      %v847 = vsel %vm793, %v696, %v846
      %v848 = vsel %vm795, %v703, %v847
      %v849 = vsel %vm797, %v710, %v848
      %v850 = vsel %vm799, %v717, %v849
      %v851 = vsel %vm801, %v724, %v850
      %vm860 = vcmask 523264
      %861 = vst.msk [vmem:[%s145] sm:$0xff] %vm860, %v802
      %862 = vst.msk [vmem:[%s145 + $0x8] sm:$0xff] %vm860, %v809
      %863 = vst.msk [vmem:[%s145 + $0x10] sm:$0xff] %vm860, %v816
      %864 = vst.msk [vmem:[%s145 + $0x18] sm:$0xff] %vm860, %v823
      %865 = vst.msk [vmem:[%s145 + $0x20] sm:$0xff] %vm860, %v830
      %866 = vst.msk [vmem:[%s145 + $0x28] sm:$0xff] %vm860, %v837
      %867 = vst.msk [vmem:[%s145 + $0x30] sm:$0xff] %vm860, %v844
      %868 = vst.msk [vmem:[%s145 + $0x38] sm:$0xff] %vm860, %v851
      %s869 = smul.u32 8, %s13
      %p870 = scmp.lt.s32.totalorder %s869, 15
      %s871 = scalar_select %p870, %s869, 15
      %s872 = smul.addr %s871, 8
      %s873 = scalar_lea.vmem %s2, %s872
      // Predicated region
      $region29: #{tpu_custom_call.1} parent=27 // pred_check
        %p874 = pneg %p78
      $region30: #{tpu_custom_call.1} parent=27 // pred_check_branch
        %876 = sbr.rel (%p874) target = $region32
      $region31: #{tpu_custom_call.1} parent=27 // pred_region
        %s877 = smul.u32 8, %s13
      $region32: #{tpu_custom_call.1} parent=27 // pred_fallthru
        _
    $region28: #{tpu_custom_call.1} parent=5 // pred_fallthru
      _
    %p878 = scmp.le.s32.totalorder 2, %s8
    // Predicated region
    $region33: #{tpu_custom_call.1} parent=5 // pred_check
      %p879 = pneg %p878
    $region34: #{tpu_custom_call.1} parent=5 // pred_check_branch
      %881 = sbr.rel (%p879) target = $region36
    $region35: #{tpu_custom_call.1} parent=5 // pred_region
      %s882 = ssub.s32 %s8, 2
      // Predicated region
      $region37: #{tpu_custom_call.1} parent=35 // pred_check
        %p883 = pneg %p84
      $region38: #{tpu_custom_call.1} parent=35 // pred_check_branch
        %885 = sbr.rel (%p883) target = $region40
      $region39: #{tpu_custom_call.1} parent=35 // pred_region
        %s886 = smul.u32 8, %s14
        %p887 = scmp.lt.s32.totalorder %s886, 15
        %s888 = scalar_select %p887, %s886, 15
        %s889 = smul.addr %s888, 8
        %s890 = scalar_lea.vmem %s2, %s889
      $region40: #{tpu_custom_call.1} parent=35 // pred_fallthru
        _
    $region36: #{tpu_custom_call.1} parent=5 // pred_fallthru
      _
  $region6: #{tpu_custom_call.1} parent=0 // loop_footer
    %s12 = sadd.s32 1, %s8
  $region7: #{tpu_custom_call.1} parent=0 // loop_footer_branch
    %7 = sbr.rel target = $region3
  $region8: #{tpu_custom_call.1} parent=0 // loop_exit
    _

</llo_original>
